<compile_context>
chip_gen: v6e
topology: v6e:2x2x1
jax: 0.10.0
libtpu: 0.0.40
codegen_flags: <defaults>
</compile_context>

<pallas_src>
import jax
import jax.numpy as jnp
from jax import lax
from jax.experimental import pallas as pl
from jax.experimental.pallas import tpu as pltpu


def _round_up(n, m):
    return ((n + m - 1) // m) * m


def tabular_policy_kernel(x_ref, m_ref, o_ref, gather_ref):
    # x_ref     : (batch_pad,) int32 SMEM (scalar prefetch) -- state indices
    # m_ref     : (n_states, a_pad) f32 VMEM -- full padded logit table, resident
    # o_ref     : (TB, a_pad)      f32 VMEM -- output probability block
    # gather_ref: (TB, a_pad)      f32 VMEM scratch -- gathered logit rows
    n_states = m_ref.shape[0]
    tb = o_ref.shape[0]
    base = pl.program_id(0) * tb

    def gather_body(j, carry):
        idx = x_ref[base + j]
        # torch-style negative-index wrap; clamp anything else (cannot raise in-kernel)
        idx = jnp.where(idx < 0, idx + n_states, idx)
        idx = jnp.clip(idx, 0, n_states - 1)
        # dynamic sublane load from the resident table, dynamic sublane store to scratch
        gather_ref[pl.ds(j, 1), :] = m_ref[pl.ds(idx, 1), :]
        return carry

    lax.fori_loop(0, tb, gather_body, 0)

    rows = gather_ref[...]                                  # (TB, a_pad)
    # max-subtracted softmax: identical result, robust to f32 exp overflow.
    row_max = jnp.max(rows, axis=-1, keepdims=True)         # XLU lane reduce
    e = jnp.exp(rows - row_max)                             # EUP; pad lanes -> exactly 0
    s = jnp.sum(e, axis=-1, keepdims=True)                  # XLU lane reduce
    o_ref[...] = e * pl.reciprocal(s, approx=False)         # exact recip, broadcast mul


def prepare_tabular_params(m_flat, n_states, n_actions):
    """One-time parameter setup (hoisted out of the forward hot path).

    Reshapes the flat parameter vector and pads the action dim up to a multiple of 128
    with -1e30 so exp() underflows to exactly 0 in the padded lanes.
    """
    a_pad = _round_up(max(n_actions, 1), 128)
    M = jnp.asarray(m_flat, dtype=jnp.float32).reshape(n_states, n_actions)
    M_pad = jnp.pad(M, ((0, 0), (0, a_pad - n_actions)), constant_values=-1e30)
    return M_pad


def tabular_policy_forward(M_pad, x, n_states, n_actions):
    """Forward pass: gather state rows from the (padded) logit table and softmax them."""
    a_pad = M_pad.shape[1]

    x_i32 = jnp.reshape(x, (-1,)).astype(jnp.int32)
    batch = x_i32.shape[0]

    # Block the batch: TB multiple of 8 (sublane-dense output), capped at 128.
    tb = min(128, _round_up(batch, 8))
    batch_pad = _round_up(batch, tb)
    if batch_pad != batch:
        x_i32 = jnp.pad(x_i32, (0, batch_pad - batch))      # pad with state 0 (valid)
    grid = (batch_pad // tb,)

    out_padded = pl.pallas_call(
        tabular_policy_kernel,
        out_shape=jax.ShapeDtypeStruct((batch_pad, a_pad), jnp.float32),
        grid_spec=pltpu.PrefetchScalarGridSpec(
            num_scalar_prefetch=1,                          # x -> SMEM, read in-kernel
            grid=grid,
            in_specs=[
                # full table, block index constant -> DMA'd once, resident in VMEM
                pl.BlockSpec((n_states, a_pad), lambda i, x_ref: (0, 0)),
            ],
            out_specs=pl.BlockSpec((tb, a_pad), lambda i, x_ref: (i, 0)),
            scratch_shapes=[pltpu.VMEM((tb, a_pad), jnp.float32)],
        ),
        compiler_params=pltpu.CompilerParams(
            dimension_semantics=("parallel",),              # batch blocks independent
        ),
    )(x_i32, M_pad)

    return out_padded[:batch, :n_actions]


if __name__ == "__main__":
    key = jax.random.PRNGKey(0)
    n_states, n_actions, batch = 16, 8, 8

    k_m, k_x = jax.random.split(key)
    # deterministic "uniform(size=n_states*n_actions)" parameter init (synthetic)
    m_flat = jax.random.uniform(k_m, (n_states * n_actions,), dtype=jnp.float32)
    # input x: batch of state indices
    x = jax.random.randint(k_x, (batch,), 0, n_states, dtype=jnp.int32)

    M_pad = prepare_tabular_params(m_flat, n_states, n_actions)   # one-time setup
    out = tabular_policy_forward(M_pad, x, n_states, n_actions)
    out = jax.block_until_ready(out)

    # pure-JAX reference (exact torch formula)
    M = m_flat.reshape(n_states, n_actions)
    tab = jnp.exp(M) / jnp.sum(jnp.exp(M), axis=1, keepdims=True)
    ref = tab[x]
    assert out.shape == (batch, n_actions)
    assert jnp.allclose(out, ref, atol=1e-6), "mismatch vs reference"
    assert jnp.allclose(jnp.sum(out, axis=1), 1.0, atol=1e-5), "rows must be probability dists"

    print("KERNEL_OK")
</pallas_src>

<mosaic_0001>
module attributes {stable_mosaic.version = 11 : i64} {
  func.func @tabular_policy_kernel(%arg0: i32, %arg1: memref<8xi32, #tpu.memory_space<smem>>, %arg2: memref<16x128xf32, #tpu.memory_space<vmem>>, %arg3: memref<8x128xf32, #tpu.memory_space<vmem>>, %arg4: memref<8x128xf32, #tpu.memory_space<vmem>>) attributes {dimension_semantics = [#tpu.dimension_semantics<parallel>], iteration_bounds = array<i64: 1>, scalar_prefetch = 1 : i64, scratch_operands = 1 : i64, tpu.core_type = #tpu.core_type<tc>, window_params = [{pipeline_mode = #tpu.pipeline_mode<synchronous>, transform_indices = @transform_0, window_bounds = array<i64: 16, 128>}, {transform_indices = @transform_1, window_bounds = array<i64: 8, 128>}]} {
    %c8_i32 = arith.constant 8 : i32
    %0 = arith.muli %arg0, %c8_i32 : i32
    %c0_i32 = arith.constant 0 : i32
    %c8_i32_0 = arith.constant 8 : i32
    %1 = arith.addi %c0_i32, %c8_i32_0 : i32
    %c1_i32 = arith.constant 1 : i32
    scf.for %arg5 = %c0_i32 to %1 step %c1_i32  : i32 {
      %14 = arith.addi %0, %arg5 : i32
      %15 = arith.index_cast %14 : i32 to index
      %16 = memref.load %arg1[%15] : memref<8xi32, #tpu.memory_space<smem>>
      %c0_i32_6 = arith.constant 0 : i32
      %17 = arith.cmpi slt, %16, %c0_i32_6 : i32
      %c16_i32 = arith.constant 16 : i32
      %18 = arith.addi %16, %c16_i32 : i32
      %19 = arith.select %17, %18, %16 : i32
      %c0_i32_7 = arith.constant 0 : i32
      %c15_i32 = arith.constant 15 : i32
      %20 = arith.maxsi %c0_i32_7, %19 : i32
      %21 = arith.minsi %c15_i32, %20 : i32
      %22 = arith.index_cast %21 : i32 to index
      %c0_8 = arith.constant 0 : index
      %23 = vector.load %arg2[%22, %c0_8] : memref<16x128xf32, #tpu.memory_space<vmem>>, vector<1x128xf32>
      %24 = arith.index_cast %arg5 : i32 to index
      %c0_9 = arith.constant 0 : index
      %25 = vector.load %arg4[%24, %c0_9] : memref<8x128xf32, #tpu.memory_space<vmem>>, vector<1x128xf32>
      tpu.vector_store %arg4[%24, %c0_9], %23 {strides = array<i32>} : memref<8x128xf32, #tpu.memory_space<vmem>>, vector<1x128xf32>,
    }
    %c8_i32_1 = arith.constant 8 : i32
    %c0 = arith.constant 0 : index
    %c0_2 = arith.constant 0 : index
    %2 = vector.load %arg4[%c0, %c0_2] : memref<8x128xf32, #tpu.memory_space<vmem>>, vector<8x128xf32>
    %cst = arith.constant dense<0xFF800000> : vector<8xf32>
    %3 = vector.multi_reduction <maximumf>, %2, %cst [1] : vector<8x128xf32> to vector<8xf32>
    %4 = vector.shape_cast %3 : vector<8xf32> to vector<8x1xf32>
    %5 = vector.broadcast %4 : vector<8x1xf32> to vector<8x128xf32>
    %6 = arith.subf %2, %5 : vector<8x128xf32>
    %7 = math.exp %6 : vector<8x128xf32>
    %cst_3 = arith.constant dense<0.000000e+00> : vector<8xf32>
    %8 = vector.multi_reduction <add>, %7, %cst_3 [1] : vector<8x128xf32> to vector<8xf32>
    %9 = vector.shape_cast %8 : vector<8xf32> to vector<8x1xf32>
    %10 = tpu.reciprocal %9 : vector<8x1xf32> -> vector<8x1xf32>
    %11 = vector.broadcast %10 : vector<8x1xf32> to vector<8x128xf32>
    %12 = arith.mulf %7, %11 : vector<8x128xf32>
    %c0_4 = arith.constant 0 : index
    %c0_5 = arith.constant 0 : index
    %13 = vector.load %arg3[%c0_4, %c0_5] : memref<8x128xf32, #tpu.memory_space<vmem>>, vector<8x128xf32>
    tpu.vector_store %arg3[%c0_4, %c0_5], %12 {strides = array<i32>} : memref<8x128xf32, #tpu.memory_space<vmem>>, vector<8x128xf32>,
    return
  }
  func.func @transform_0(%arg0: i32, %arg1: memref<8xi32, #tpu.memory_space<smem>>) -> (i32, i32) {
    %c0_i32 = arith.constant 0 : i32
    %c0_i32_0 = arith.constant 0 : i32
    %c0_i32_1 = arith.constant 0 : i32
    return %c0_i32, %c0_i32_0 : i32, i32
  }
  func.func @transform_1(%arg0: i32, %arg1: memref<8xi32, #tpu.memory_space<smem>>) -> (i32, i32) {
    %c0_i32 = arith.constant 0 : i32
    %c0_i32_0 = arith.constant 0 : i32
    return %arg0, %c0_i32 : i32, i32
  }
}

</mosaic_0001>

<llo_original>
// kernel: tpu_custom_call.1
$region0: #{tpu_custom_call.1}
  #allocation0 [shape = 'u32[]', space=smem, size = 0x4, offset = 0x4, fixed_abs, tag = 'smem constant byte address 0x4 - core index']
  #allocation1 [shape = 'u32[144,128]{1,0:T(1,128)}', space=vmem, size = 0x12000, scoped, tag = 'internal scratch']
  #allocation2 [shape = 'f32[8,128]{1,0:T(8,128)}', space=vmem, size = 0x1000, scoped, tag = 'scratch operand']
  #allocation3 [shape = 's32[1]{0}', space=sflag, size = 0x4, scoped, tag = 'scoped memory for tpu_custom_call.1']
  #allocation4 [shape = 'u8[512]{0}', space=smem, size = 0x200, scoped, tag = 'prefetched SMEM operand 0']
  %s0 = inlined_call_operand.hbm [shape: s32[8], index: 0, kind: input, shape index: {}]
  %s1 = inlined_call_operand.hbm [shape: f32[16,128], index: 1, kind: input, shape index: {}]
  %s2 = inlined_call_operand.hbm [shape: f32[8,128], index: 2, kind: output, shape index: {}]
  %s3 = sld [smem:[#allocation0]]
  $region25: #{tpu_custom_call.1} parent=0
    _
  %s5 = ssub.s32 1, %s3
  %s6 = scalar_select 0, %s5, %s3
  %8 = dma.hbm_to_smem %s0, 16, [#allocation4], [#allocation3]
  %9 = dma.done [#allocation3], 16
  %10 = sfence
  $region1: #{tpu_custom_call.1} parent=0
    #allocation5 [shape = 'u8[8192]{0}', space=vmem, size = 0x2000, scoped, tag = 'input window, operand 1, single buffered']
    #allocation6 [shape = 's32[1]{0}', space=sflag, size = 0x4, scoped, tag = 'scoped memory for tpu_custom_call.1']
    #allocation7 [shape = 's32[1]{0}', space=sflag, size = 0x4, scoped, tag = 'scoped memory for tpu_custom_call.1']
    #allocation8 [shape = 'u8[4096]{0}', space=vmem, size = 0x1000, scoped, tag = 'output window, operand 0, single buffered']
    %11 = vsyncpa [#allocation6], 0
    %12 = vsyncpa [#allocation7], 0
    // Predicated region
    $region2: #{tpu_custom_call.1} parent=1 // pred_check
      _
    $region3: #{tpu_custom_call.1} parent=1 // pred_check_branch
      %14 = sbr.rel (0) target = $region5
    $region4: #{tpu_custom_call.1} parent=1 // pred_region
      %s16 = ssub.s32 256, 256
      %17 = vsyncadd [#allocation6], %s16
      %s18 = sshll.u32 [#allocation5], 4
      %s19 = int_to_ptr.vmem [resolvable:$true] %s18
      %24 = dma.hbm_to_vmem [thread:$0]  %s1, 256, %s19, [#allocation6], 128, 128, 8
    $region5: #{tpu_custom_call.1} parent=1 // pred_fallthru
      _
    // Predicated region
    $region6: #{tpu_custom_call.1} parent=1 // pred_check
      _
    $region7: #{tpu_custom_call.1} parent=1 // pred_check_branch
      %26 = sbr.rel (0) target = $region9
    $region8: #{tpu_custom_call.1} parent=1 // pred_region
      %27 = dma.done [#allocation6], 256
    $region9: #{tpu_custom_call.1} parent=1 // pred_fallthru
      _
    %s28 = smul.u32 0, 8
    loop: start=0, step=1, limit=8
    $region10: #{tpu_custom_call.1} parent=1 // loop_pre_header
      _
    $region11: #{tpu_custom_call.1} parent=1 // loop_header
      %s30 = sphi 0, %s34
      %p31 = scmp.ge.s32.totalorder %s30, 8
    $region12: #{tpu_custom_call.1} parent=1 // loop_header_branch
      %33 = sbr.rel (%p31) target = $region16
    $region13: #{tpu_custom_call.1} parent=1 // loop_body
      %s35 = sadd.s32 %s28, %s30
      %s36 = sld [smem:[#allocation4 + %s35]]
      %p37 = scmp.lt.s32.totalorder %s36, 0
      %s38 = sadd.s32 %s36, 16
      %s39 = scalar_select %p37, %s38, %s36
      %p40 = scmp.gt.s32.totalorder %s39, 0
      %s41 = scalar_select %p40, %s39, 0
      %p42 = scmp.lt.s32.totalorder %s41, 15
      %s43 = scalar_select %p42, %s41, 15
      %s44 = scalar_lea.vmem [#allocation5], %s43
      %v45 = vld [vmem:[%s44] sm:$0x1]
      %s46 = scalar_lea.vmem [#allocation2], %s30
      %47 = vst [vmem:[%s46] sm:$0x1] %v45
    $region14: #{tpu_custom_call.1} parent=1 // loop_footer
      %s34 = sadd.s32 1, %s30
    $region15: #{tpu_custom_call.1} parent=1 // loop_footer_branch
      %29 = sbr.rel target = $region11
    $region16: #{tpu_custom_call.1} parent=1 // loop_exit
      _
    %v48 = vld [vmem:[#allocation2] sm:$0xff]
    %49 = vmax.xlane.f32.xlu0 %v48
    %v50 = vpop.xlane.xlu0 %49
    %v51 = vsub.f32 %v48, %v50
    %v52 = vmul.f32 %v51, 1.442695
    %v53 = vpow.pop %v52
    %54 = vadd.xlane.f32.xlu0 %v53
    %v55 = vpop.xlane.xlu0 %54
    %v56 = vrcp.pop %v55
    %v57 = vmul.f32 %v53, %v56
    %58 = vst [vmem:[#allocation8] sm:$0xff] %v57
    // Predicated region
    $region17: #{tpu_custom_call.1} parent=1 // pred_check
      _
    $region18: #{tpu_custom_call.1} parent=1 // pred_check_branch
      %60 = sbr.rel (0) target = $region20
    $region19: #{tpu_custom_call.1} parent=1 // pred_region
      %s62 = ssub.s32 128, 128
      %63 = vsyncadd [#allocation7], %s62
      %s65 = sshll.u32 [#allocation8], 4
      %s66 = int_to_ptr.vmem [resolvable:$true] %s65
      %68 = dma.vmem_to_hbm [thread:$0]  %s66, 128, %s2, [#allocation7]
    $region20: #{tpu_custom_call.1} parent=1 // pred_fallthru
      _
    // Predicated region
    $region21: #{tpu_custom_call.1} parent=1 // pred_check
      _
    $region22: #{tpu_custom_call.1} parent=1 // pred_check_branch
      %70 = sbr.rel (0) target = $region24
    $region23: #{tpu_custom_call.1} parent=1 // pred_region
      %71 = dma.done [#allocation7], 128
    $region24: #{tpu_custom_call.1} parent=1 // pred_fallthru
      _
    %72 = vsyncpa [#allocation6], 1
    %73 = vsyncpa [#allocation7], 1

</llo_original>
